<compile_context>
chip_gen: v7x
topology: tpu7x:2x2x1
jax: 0.10.0
libtpu: 0.0.40
codegen_flags: <defaults>
</compile_context>

<pallas_src>
import functools

import jax
import jax.numpy as jnp
from jax import lax
from jax.experimental import pallas as pl
from jax.experimental.pallas import tpu as pltpu

LN_EPS = 1e-5
LANE = 128


def _round_up(n, m):
    return ((n + m - 1) // m) * m


def _pad2(a, rows, cols):
    pr, pc = rows - a.shape[0], cols - a.shape[1]
    if pr or pc:
        a = jnp.pad(a, ((0, pr), (0, pc)))
    return a


def _pick_tb(B, block_batch=256):
    """Batch tile: multiple of 16 (bf16 sublane packing), MXU-friendly size, >=2 grid
    steps for non-tiny batches (v7x's 2 TCs share the parallel axis, and >=2 steps lets
    the x/out pipeline overlap), with minimal grid-pad waste."""
    b16 = _round_up(max(B, 1), 16)
    if b16 <= 64:                       # tiny batch: single step, minimal padding
        return min(b16, _round_up(block_batch, 16))
    # Very large batches: don't slice into hundreds of tiny steps (per-step overhead).
    cands = (256, 128) if b16 >= 512 else (256, 128, 64)
    best_tb, best_key = None, None
    for tb in cands:
        if tb > block_batch:
            continue
        steps = -(-b16 // tb)
        if steps < 2:                   # want >=2 parallel steps when the batch allows
            continue
        pad = steps * tb - B
        key = (pad, -tb)                # least grid-pad waste, then largest tile
        if best_key is None or key < best_key:
            best_tb, best_key = tb, key
    if best_tb is not None:
        return best_tb
    return max(16, min(b16, min(128, _round_up(block_batch, 16))))


# --------------------------------------------------------------------------------------
# Kernel
# --------------------------------------------------------------------------------------
def expert_kernel(x_ref, w_in_ref, w_h1_ref, w_h2_ref, w_out_ref, vec_ref,
                  out_ref, *, hidden_dim):
    h_pad = w_in_ref.shape[1]
    half_p = w_h2_ref.shape[1]
    d_out_p = w_out_ref.shape[1]
    inv_n = jnp.float32(1.0 / hidden_dim)

    # Packed bias / LayerNorm-affine vectors: one (8, h_pad) f32 load, static slices.
    vecs = vec_ref[...]
    b_in = vecs[0:1, :]
    ln1_w = vecs[1:2, :]
    ln1_b = vecs[2:3, :]
    b_h1 = vecs[3:4, :]
    ln2_w = vecs[4:5, :]
    ln2_b = vecs[5:6, :]
    b_h2 = vecs[6:7, :half_p]
    b_out = vecs[7:8, :d_out_p]

    # Static lane mask (features live on the lane axis); only needed when hidden_dim was
    # padded up to a multiple of 128.
    if h_pad == hidden_dim:
        mask = None
    else:
        lane_idx = lax.broadcasted_iota(jnp.int32, (1, h_pad), 1)
        mask = lane_idx < hidden_dim

    def layer_norm(h, w, b):
        # Padded lanes of h are exactly zero by construction (zero-padded weights,
        # biases and residual), so the unmasked sum already equals the sum over the
        # real hidden_dim lanes -> no select needed for the mean.
        mu = jnp.sum(h, axis=-1, keepdims=True) * inv_n
        d = (h - mu) if mask is None else jnp.where(mask, h - mu, 0.0)
        var = jnp.sum(d * d, axis=-1, keepdims=True) * inv_n
        # Padded lanes of w/b are zero -> padded lanes of the result stay exactly zero.
        return d * lax.rsqrt(var + LN_EPS) * w + b

    # h0 = relu(input_layer(x)) -- x and weights are bf16, f32 accumulation on the MXU.
    x = x_ref[...]
    h0 = jnp.dot(x, w_in_ref[...], preferred_element_type=jnp.float32) + b_in
    h0 = jnp.maximum(h0, 0.0)

    # hidden1: LayerNorm -> ReLU -> Dropout(eval: identity) -> Linear ; + residual
    n1 = layer_norm(h0, ln1_w, ln1_b)
    a1 = jnp.maximum(n1, 0.0)
    h1 = (jnp.dot(a1.astype(jnp.bfloat16), w_h1_ref[...],
                  preferred_element_type=jnp.float32)
          + b_h1 + h0)

    # hidden2: LayerNorm -> SiLU -> Dropout(eval: identity) -> Linear
    n2 = layer_norm(h1, ln2_w, ln2_b)
    a2 = n2 * jax.nn.sigmoid(n2)  # SiLU (sigmoid -> EUP slot)
    h2 = (jnp.dot(a2.astype(jnp.bfloat16), w_h2_ref[...],
                  preferred_element_type=jnp.float32)
          + b_h2)

    # output_layer
    out = (jnp.dot(h2.astype(jnp.bfloat16), w_out_ref[...],
                   preferred_element_type=jnp.float32)
           + b_out)
    out_ref[...] = out.astype(out_ref.dtype)


# --------------------------------------------------------------------------------------
# One-time parameter preparation (hoisted out of the per-call path; cache the result)
# --------------------------------------------------------------------------------------
def prepare_params(params):
    """Pad all parameters to lane-dense (multiple-of-128) shapes, cast matmul weights to
    bf16, and pack the eight (1, *) bias / LayerNorm-affine vectors into one (8, h_p)
    f32 array. Call once and reuse across forwards."""
    d_in, H = params["w_in"].shape
    half = params["w_h2"].shape[1]
    d_out = params["w_out"].shape[1]

    d_in_p = _round_up(d_in, LANE)
    h_p = _round_up(H, LANE)
    half_p = _round_up(half, LANE)
    d_out_p = _round_up(d_out, LANE)

    w_in = _pad2(params["w_in"], d_in_p, h_p).astype(jnp.bfloat16)
    w_h1 = _pad2(params["w_h1"], h_p, h_p).astype(jnp.bfloat16)
    w_h2 = _pad2(params["w_h2"], h_p, half_p).astype(jnp.bfloat16)
    w_out = _pad2(params["w_out"], half_p, d_out_p).astype(jnp.bfloat16)

    vec_pack = jnp.concatenate([
        _pad2(params["b_in"], 1, h_p),
        _pad2(params["ln1_w"], 1, h_p),
        _pad2(params["ln1_b"], 1, h_p),
        _pad2(params["b_h1"], 1, h_p),
        _pad2(params["ln2_w"], 1, h_p),
        _pad2(params["ln2_b"], 1, h_p),
        _pad2(params["b_h2"], 1, h_p),     # real lanes: half_p
        _pad2(params["b_out"], 1, h_p),    # real lanes: d_out_p
    ], axis=0).astype(jnp.float32)         # (8, h_p) f32

    return dict(w_in=w_in, w_h1=w_h1, w_h2=w_h2, w_out=w_out, vec_pack=vec_pack,
                input_dim=d_in, hidden_dim=H, half_dim=half, output_dim=d_out,
                d_in_p=d_in_p, h_p=h_p, half_p=half_p, d_out_p=d_out_p)


# --------------------------------------------------------------------------------------
# Forward wrapper
# --------------------------------------------------------------------------------------
def expert_forward(x, prep, *, block_batch=256):
    """x: (B, input_dim) f32. prep: output of prepare_params()."""
    B = x.shape[0]
    d_in_p, h_p = prep["d_in_p"], prep["h_p"]
    half_p, d_out_p = prep["half_p"], prep["d_out_p"]
    H, d_out = prep["hidden_dim"], prep["output_dim"]

    weight_args = (prep["w_in"], prep["w_h1"], prep["w_h2"], prep["w_out"],
                   prep["vec_pack"])

    def _nbytes(a):
        return int(a.size) * a.dtype.itemsize

    # Resident weight VMEM: single-buffered (Buffered(1)) -> one copy of each.
    resident = sum(_nbytes(a) for a in weight_args)

    # Generation-aware VMEM budget (v5e/v6e: 128 MiB, v7x: 64 MiB), with ~20% headroom
    # for compiler-internal scratch and the double-buffered x/out tiles.
    try:
        vmem_cap = int(pltpu.get_tpu_info().vmem_capacity_bytes)
    except Exception:
        vmem_cap = 64 << 20            # conservative (v7x-sized) if the query fails
    budget = int(vmem_cap * 0.80)

    TB = _pick_tb(B, block_batch)

    def _need(tb):
        io = 2 * tb * d_in_p * 2 + 2 * tb * d_out_p * 4   # double-buffered x(bf16)/out(f32)
        interm = 10 * tb * h_p * 4                        # live f32 intermediates (headroom)
        return resident + io + interm

    # Fallback: shrink the batch tile until the plan fits the generation's budget.
    while _need(TB) > budget and TB > 16:
        TB = max(16, TB // 2)
    # TODO(synk): if resident bf16 weights alone exceed ~0.8*VMEM (very large hidden_dim
    # on v7x), tile the w_h1/w_h2 matmuls over their N dimension instead of residency.

    B_p = _round_up(B, TB)
    x_p = _pad2(x, B_p, d_in_p).astype(jnp.bfloat16)

    vmem_limit = int(min(max(int(1.25 * _need(TB)), 32 << 20), budget))

    x_spec = pl.BlockSpec((TB, d_in_p), lambda i: (i, 0))
    out_spec = pl.BlockSpec((TB, d_out_p), lambda i: (i, 0))
    # Constant index_map + single buffer: each weight is DMA'd once and stays resident
    # in VMEM across all grid steps (no wasted second pipeline buffer).
    weight_specs = [
        pl.BlockSpec(a.shape, lambda i: (0, 0), pipeline_mode=pl.Buffered(1))
        for a in weight_args
    ]

    flops = 2 * B_p * (d_in_p * h_p + h_p * h_p + h_p * half_p + half_p * d_out_p)
    bytes_accessed = _nbytes(x_p) + resident + B_p * d_out_p * 4
    cost = pl.CostEstimate(flops=int(flops),
                           transcendentals=int(B_p * h_p),
                           bytes_accessed=int(bytes_accessed))

    grid = (pl.cdiv(B_p, TB),)
    out_padded = pl.pallas_call(
        functools.partial(expert_kernel, hidden_dim=H),
        out_shape=jax.ShapeDtypeStruct((B_p, d_out_p), jnp.float32),
        grid=grid,
        in_specs=[x_spec] + weight_specs,
        out_specs=out_spec,
        compiler_params=pltpu.CompilerParams(
            dimension_semantics=("parallel",),
            vmem_limit_bytes=vmem_limit,
        ),
        cost_estimate=cost,
    )(x_p, *weight_args)

    return out_padded[:B, :d_out]


# --------------------------------------------------------------------------------------
# Synthetic parameter init (mirrors the PyTorch module's initialization; weights stored
# transposed, i.e. (in_features, out_features)).
# --------------------------------------------------------------------------------------
def init_params(key, input_dim, hidden_dim, output_dim, expert_id=None):
    half = hidden_dim // 2
    ks = jax.random.split(key, 8)

    # input_layer: kaiming_normal (relu), bias = 0.1
    w_in = jax.random.normal(ks[0], (input_dim, hidden_dim), jnp.float32) * jnp.sqrt(2.0 / input_dim)
    b_in = jnp.full((1, hidden_dim), 0.1, jnp.float32)

    # hidden1 Linear: kaiming_uniform (relu), bias = 0.1
    bound1 = jnp.sqrt(6.0 / hidden_dim)
    w_h1 = jax.random.uniform(ks[1], (hidden_dim, hidden_dim), jnp.float32, -bound1, bound1)
    b_h1 = jnp.full((1, hidden_dim), 0.1, jnp.float32)

    # hidden2 Linear: kaiming_uniform (relu), bias = 0.1
    bound2 = jnp.sqrt(6.0 / hidden_dim)
    w_h2 = jax.random.uniform(ks[2], (hidden_dim, half), jnp.float32, -bound2, bound2)
    b_h2 = jnp.full((1, half), 0.1, jnp.float32)

    # output_layer: xavier_normal gain=0.1, bias = 0.0
    w_out = jax.random.normal(ks[3], (half, output_dim), jnp.float32) * (0.1 * jnp.sqrt(2.0 / (half + output_dim)))
    b_out = jnp.zeros((1, output_dim), jnp.float32)

    # LayerNorm affine params (PyTorch default: weight=1, bias=0)
    ln1_w = jnp.ones((1, hidden_dim), jnp.float32)
    ln1_b = jnp.zeros((1, hidden_dim), jnp.float32)
    ln2_w = jnp.ones((1, hidden_dim), jnp.float32)
    ln2_b = jnp.zeros((1, hidden_dim), jnp.float32)

    # expert_id bias perturbation (deterministic per expert)
    if expert_id is not None:
        pk = jax.random.PRNGKey(expert_id * 1337 % 10000)
        pk1, pk2 = jax.random.split(pk)
        b_in = b_in + jax.random.normal(pk1, b_in.shape, jnp.float32) * 0.01
        b_out = b_out + jax.random.normal(pk2, b_out.shape, jnp.float32) * 0.01

    return dict(w_in=w_in, b_in=b_in,
                ln1_w=ln1_w, ln1_b=ln1_b, w_h1=w_h1, b_h1=b_h1,
                ln2_w=ln2_w, ln2_b=ln2_b, w_h2=w_h2, b_h2=b_h2,
                w_out=w_out, b_out=b_out)


def expert_forward_ref(x, p, matmul_dtype=jnp.float32):
    """Pure-JAX reference. matmul_dtype=bf16 mirrors the kernel's MXU precision."""
    def mm(a, w):
        return jnp.dot(a.astype(matmul_dtype), w.astype(matmul_dtype),
                       preferred_element_type=jnp.float32)
    h0 = jax.nn.relu(mm(x, p["w_in"]) + p["b_in"])
    mu1 = h0.mean(-1, keepdims=True)
    v1 = ((h0 - mu1) ** 2).mean(-1, keepdims=True)
    n1 = (h0 - mu1) / jnp.sqrt(v1 + LN_EPS) * p["ln1_w"] + p["ln1_b"]
    h1 = mm(jax.nn.relu(n1), p["w_h1"]) + p["b_h1"] + h0
    mu2 = h1.mean(-1, keepdims=True)
    v2 = ((h1 - mu2) ** 2).mean(-1, keepdims=True)
    n2 = (h1 - mu2) / jnp.sqrt(v2 + LN_EPS) * p["ln2_w"] + p["ln2_b"]
    h2 = mm(jax.nn.silu(n2), p["w_h2"]) + p["b_h2"]
    return mm(h2, p["w_out"]) + p["b_out"]


if __name__ == "__main__":
    input_dim, hidden_dim, output_dim = 16, 32, 4
    batch = 8

    key = jax.random.PRNGKey(0)
    kx, kp = jax.random.split(key)
    x = jax.random.normal(kx, (batch, input_dim), jnp.float32)
    params = init_params(kp, input_dim, hidden_dim, output_dim, expert_id=3)

    prep = prepare_params(params)          # one-time pad + bf16 cast (cache & reuse)
    out = expert_forward(x, prep)
    out = jax.block_until_ready(out)
    assert out.shape == (batch, output_dim)

    # Primary check: same math at the same (bf16-matmul) precision as the kernel.
    ref_bf16 = expert_forward_ref(x, params, matmul_dtype=jnp.bfloat16)
    assert jnp.allclose(out, ref_bf16, atol=2e-3, rtol=2e-2), "mismatch vs bf16-matmul reference"

    # Sanity check: close to the full-f32 PyTorch-equivalent forward.
    ref_f32 = expert_forward_ref(x, params, matmul_dtype=jnp.float32)
    assert jnp.allclose(out, ref_f32, atol=2e-2, rtol=2e-2), "mismatch vs f32 reference"

    print("KERNEL_OK")
</pallas_src>

<mosaic_0001>
module attributes {stable_mosaic.version = 11 : i64} {
  func.func @expert_kernel(%arg0: i32, %arg1: memref<16x128xbf16, #tpu.memory_space<vmem>>, %arg2: memref<128x128xbf16, #tpu.memory_space<vmem>>, %arg3: memref<128x128xbf16, #tpu.memory_space<vmem>>, %arg4: memref<128x128xbf16, #tpu.memory_space<vmem>>, %arg5: memref<128x128xbf16, #tpu.memory_space<vmem>>, %arg6: memref<8x128xf32, #tpu.memory_space<vmem>>, %arg7: memref<16x128xf32, #tpu.memory_space<vmem>>) attributes {dimension_semantics = [#tpu.dimension_semantics<parallel>], iteration_bounds = array<i64: 1>, scalar_prefetch = 0 : i64, scratch_operands = 0 : i64, tpu.core_type = #tpu.core_type<tc>, window_params = [{transform_indices = @transform_0, window_bounds = array<i64: 16, 128>}, {pipeline_mode = #tpu.pipeline_mode<synchronous>, transform_indices = @transform_1, window_bounds = array<i64: 128, 128>}, {pipeline_mode = #tpu.pipeline_mode<synchronous>, transform_indices = @transform_2, window_bounds = array<i64: 128, 128>}, {pipeline_mode = #tpu.pipeline_mode<synchronous>, transform_indices = @transform_3, window_bounds = array<i64: 128, 128>}, {pipeline_mode = #tpu.pipeline_mode<synchronous>, transform_indices = @transform_4, window_bounds = array<i64: 128, 128>}, {pipeline_mode = #tpu.pipeline_mode<synchronous>, transform_indices = @transform_5, window_bounds = array<i64: 8, 128>}, {transform_indices = @transform_6, window_bounds = array<i64: 16, 128>}]} {
    %c0 = arith.constant 0 : index
    %c0_0 = arith.constant 0 : index
    %0 = vector.load %arg6[%c0, %c0_0] : memref<8x128xf32, #tpu.memory_space<vmem>>, vector<8x128xf32>
    %1 = vector.extract_strided_slice %0 {offsets = [0, 0], sizes = [1, 128], strides = [1, 1]} : vector<8x128xf32> to vector<1x128xf32>
    %2 = vector.extract_strided_slice %0 {offsets = [1, 0], sizes = [1, 128], strides = [1, 1]} : vector<8x128xf32> to vector<1x128xf32>
    %3 = vector.extract_strided_slice %0 {offsets = [2, 0], sizes = [1, 128], strides = [1, 1]} : vector<8x128xf32> to vector<1x128xf32>
    %4 = vector.extract_strided_slice %0 {offsets = [3, 0], sizes = [1, 128], strides = [1, 1]} : vector<8x128xf32> to vector<1x128xf32>
    %5 = vector.extract_strided_slice %0 {offsets = [4, 0], sizes = [1, 128], strides = [1, 1]} : vector<8x128xf32> to vector<1x128xf32>
    %6 = vector.extract_strided_slice %0 {offsets = [5, 0], sizes = [1, 128], strides = [1, 1]} : vector<8x128xf32> to vector<1x128xf32>
    %7 = vector.extract_strided_slice %0 {offsets = [6, 0], sizes = [1, 128], strides = [1, 1]} : vector<8x128xf32> to vector<1x128xf32>
    %8 = vector.extract_strided_slice %0 {offsets = [7, 0], sizes = [1, 128], strides = [1, 1]} : vector<8x128xf32> to vector<1x128xf32>
    %9 = tpu.iota {dimensions = array<i32: 1>} : vector<1x128xi32>
    %c32_i32 = arith.constant 32 : i32
    %10 = vector.broadcast %c32_i32 : i32 to vector<1x128xi32>
    %11 = arith.cmpi slt, %9, %10 : vector<1x128xi32>
    %c0_1 = arith.constant 0 : index
    %c0_2 = arith.constant 0 : index
    %12 = vector.load %arg1[%c0_1, %c0_2] : memref<16x128xbf16, #tpu.memory_space<vmem>>, vector<16x128xbf16>
    %c0_3 = arith.constant 0 : index
    %c0_4 = arith.constant 0 : index
    %13 = vector.load %arg2[%c0_3, %c0_4] : memref<128x128xbf16, #tpu.memory_space<vmem>>, vector<128x128xbf16>
    %cst = arith.constant dense<0.000000e+00> : vector<16x128xf32>
    %14 = tpu.matmul %12, %13, %cst {dimension_numbers = #tpu.dot_dimension_numbers<[1], [0], [0], [1], [0, 0, 1, 1], [], []>} : vector<16x128xbf16>, vector<128x128xbf16>, vector<16x128xf32> -> vector<16x128xf32>
    %15 = vector.broadcast %1 : vector<1x128xf32> to vector<16x128xf32>
    %16 = arith.addf %14, %15 : vector<16x128xf32>
    %cst_5 = arith.constant 0.000000e+00 : f32
    %17 = vector.broadcast %cst_5 : f32 to vector<16x128xf32>
    %18 = arith.maximumf %16, %17 : vector<16x128xf32>
    %cst_6 = arith.constant dense<0.000000e+00> : vector<16xf32>
    %19 = vector.multi_reduction <add>, %18, %cst_6 [1] : vector<16x128xf32> to vector<16xf32>
    %20 = vector.shape_cast %19 : vector<16xf32> to vector<16x1xf32>
    %cst_7 = arith.constant 3.125000e-02 : f32
    %21 = vector.broadcast %cst_7 : f32 to vector<16x1xf32>
    %22 = arith.mulf %20, %21 : vector<16x1xf32>
    %23 = vector.broadcast %22 : vector<16x1xf32> to vector<16x128xf32>
    %24 = arith.subf %18, %23 : vector<16x128xf32>
    %cst_8 = arith.constant 0.000000e+00 : f32
    %25 = vector.shape_cast %11 : vector<1x128xi1> to vector<1x128xi1>
    %26 = vector.broadcast %25 : vector<1x128xi1> to vector<16x128xi1>
    %27 = vector.broadcast %cst_8 : f32 to vector<16x128xf32>
    %28 = arith.select %26, %24, %27 : vector<16x128xi1>, vector<16x128xf32>
    %29 = arith.mulf %28, %28 : vector<16x128xf32>
    %cst_9 = arith.constant dense<0.000000e+00> : vector<16xf32>
    %30 = vector.multi_reduction <add>, %29, %cst_9 [1] : vector<16x128xf32> to vector<16xf32>
    %31 = vector.shape_cast %30 : vector<16xf32> to vector<16x1xf32>
    %cst_10 = arith.constant 3.125000e-02 : f32
    %32 = vector.broadcast %cst_10 : f32 to vector<16x1xf32>
    %33 = arith.mulf %31, %32 : vector<16x1xf32>
    %cst_11 = arith.constant 9.99999974E-6 : f32
    %34 = vector.broadcast %cst_11 : f32 to vector<16x1xf32>
    %35 = arith.addf %33, %34 : vector<16x1xf32>
    %36 = math.rsqrt %35 : vector<16x1xf32>
    %37 = vector.broadcast %36 : vector<16x1xf32> to vector<16x128xf32>
    %38 = arith.mulf %28, %37 : vector<16x128xf32>
    %39 = vector.broadcast %2 : vector<1x128xf32> to vector<16x128xf32>
    %40 = arith.mulf %38, %39 : vector<16x128xf32>
    %41 = vector.broadcast %3 : vector<1x128xf32> to vector<16x128xf32>
    %42 = arith.addf %40, %41 : vector<16x128xf32>
    %cst_12 = arith.constant 0.000000e+00 : f32
    %43 = vector.broadcast %cst_12 : f32 to vector<16x128xf32>
    %44 = arith.maximumf %42, %43 : vector<16x128xf32>
    %45 = arith.truncf %44 : vector<16x128xf32> to vector<16x128xbf16>
    %c0_13 = arith.constant 0 : index
    %c0_14 = arith.constant 0 : index
    %46 = vector.load %arg3[%c0_13, %c0_14] : memref<128x128xbf16, #tpu.memory_space<vmem>>, vector<128x128xbf16>
    %cst_15 = arith.constant dense<0.000000e+00> : vector<16x128xf32>
    %47 = tpu.matmul %45, %46, %cst_15 {dimension_numbers = #tpu.dot_dimension_numbers<[1], [0], [0], [1], [0, 0, 1, 1], [], []>} : vector<16x128xbf16>, vector<128x128xbf16>, vector<16x128xf32> -> vector<16x128xf32>
    %48 = vector.broadcast %4 : vector<1x128xf32> to vector<16x128xf32>
    %49 = arith.addf %47, %48 : vector<16x128xf32>
    %50 = arith.addf %49, %18 : vector<16x128xf32>
    %cst_16 = arith.constant dense<0.000000e+00> : vector<16xf32>
    %51 = vector.multi_reduction <add>, %50, %cst_16 [1] : vector<16x128xf32> to vector<16xf32>
    %52 = vector.shape_cast %51 : vector<16xf32> to vector<16x1xf32>
    %cst_17 = arith.constant 3.125000e-02 : f32
    %53 = vector.broadcast %cst_17 : f32 to vector<16x1xf32>
    %54 = arith.mulf %52, %53 : vector<16x1xf32>
    %55 = vector.broadcast %54 : vector<16x1xf32> to vector<16x128xf32>
    %56 = arith.subf %50, %55 : vector<16x128xf32>
    %cst_18 = arith.constant 0.000000e+00 : f32
    %57 = vector.shape_cast %11 : vector<1x128xi1> to vector<1x128xi1>
    %58 = vector.broadcast %57 : vector<1x128xi1> to vector<16x128xi1>
    %59 = vector.broadcast %cst_18 : f32 to vector<16x128xf32>
    %60 = arith.select %58, %56, %59 : vector<16x128xi1>, vector<16x128xf32>
    %61 = arith.mulf %60, %60 : vector<16x128xf32>
    %cst_19 = arith.constant dense<0.000000e+00> : vector<16xf32>
    %62 = vector.multi_reduction <add>, %61, %cst_19 [1] : vector<16x128xf32> to vector<16xf32>
    %63 = vector.shape_cast %62 : vector<16xf32> to vector<16x1xf32>
    %cst_20 = arith.constant 3.125000e-02 : f32
    %64 = vector.broadcast %cst_20 : f32 to vector<16x1xf32>
    %65 = arith.mulf %63, %64 : vector<16x1xf32>
    %cst_21 = arith.constant 9.99999974E-6 : f32
    %66 = vector.broadcast %cst_21 : f32 to vector<16x1xf32>
    %67 = arith.addf %65, %66 : vector<16x1xf32>
    %68 = math.rsqrt %67 : vector<16x1xf32>
    %69 = vector.broadcast %68 : vector<16x1xf32> to vector<16x128xf32>
    %70 = arith.mulf %60, %69 : vector<16x128xf32>
    %71 = vector.broadcast %5 : vector<1x128xf32> to vector<16x128xf32>
    %72 = arith.mulf %70, %71 : vector<16x128xf32>
    %73 = vector.broadcast %6 : vector<1x128xf32> to vector<16x128xf32>
    %74 = arith.addf %72, %73 : vector<16x128xf32>
    %75 = arith.negf %74 : vector<16x128xf32>
    %76 = math.exp %75 : vector<16x128xf32>
    %cst_22 = arith.constant 1.000000e+00 : f32
    %77 = vector.broadcast %cst_22 : f32 to vector<16x128xf32>
    %78 = arith.addf %77, %76 : vector<16x128xf32>
    %79 = arith.divf %77, %78 : vector<16x128xf32>
    %80 = arith.mulf %74, %79 : vector<16x128xf32>
    %81 = arith.truncf %80 : vector<16x128xf32> to vector<16x128xbf16>
    %c0_23 = arith.constant 0 : index
    %c0_24 = arith.constant 0 : index
    %82 = vector.load %arg4[%c0_23, %c0_24] : memref<128x128xbf16, #tpu.memory_space<vmem>>, vector<128x128xbf16>
    %cst_25 = arith.constant dense<0.000000e+00> : vector<16x128xf32>
    %83 = tpu.matmul %81, %82, %cst_25 {dimension_numbers = #tpu.dot_dimension_numbers<[1], [0], [0], [1], [0, 0, 1, 1], [], []>} : vector<16x128xbf16>, vector<128x128xbf16>, vector<16x128xf32> -> vector<16x128xf32>
    %84 = vector.broadcast %7 : vector<1x128xf32> to vector<16x128xf32>
    %85 = arith.addf %83, %84 : vector<16x128xf32>
    %86 = arith.truncf %85 : vector<16x128xf32> to vector<16x128xbf16>
    %c0_26 = arith.constant 0 : index
    %c0_27 = arith.constant 0 : index
    %87 = vector.load %arg5[%c0_26, %c0_27] : memref<128x128xbf16, #tpu.memory_space<vmem>>, vector<128x128xbf16>
    %cst_28 = arith.constant dense<0.000000e+00> : vector<16x128xf32>
    %88 = tpu.matmul %86, %87, %cst_28 {dimension_numbers = #tpu.dot_dimension_numbers<[1], [0], [0], [1], [0, 0, 1, 1], [], []>} : vector<16x128xbf16>, vector<128x128xbf16>, vector<16x128xf32> -> vector<16x128xf32>
    %89 = vector.broadcast %8 : vector<1x128xf32> to vector<16x128xf32>
    %90 = arith.addf %88, %89 : vector<16x128xf32>
    %c0_29 = arith.constant 0 : index
    %c0_30 = arith.constant 0 : index
    %91 = vector.load %arg7[%c0_29, %c0_30] : memref<16x128xf32, #tpu.memory_space<vmem>>, vector<16x128xf32>
    tpu.vector_store %arg7[%c0_29, %c0_30], %90 {strides = array<i32>} : memref<16x128xf32, #tpu.memory_space<vmem>>, vector<16x128xf32>,
    return
  }
  func.func @transform_0(%arg0: i32) -> (i32, i32) {
    %c0_i32 = arith.constant 0 : i32
    %c0_i32_0 = arith.constant 0 : i32
    return %arg0, %c0_i32 : i32, i32
  }
  func.func @transform_1(%arg0: i32) -> (i32, i32) {
    %c0_i32 = arith.constant 0 : i32
    %c0_i32_0 = arith.constant 0 : i32
    %c0_i32_1 = arith.constant 0 : i32
    return %c0_i32, %c0_i32_0 : i32, i32
  }
  func.func @transform_2(%arg0: i32) -> (i32, i32) {
    %c0_i32 = arith.constant 0 : i32
    %c0_i32_0 = arith.constant 0 : i32
    %c0_i32_1 = arith.constant 0 : i32
    return %c0_i32, %c0_i32_0 : i32, i32
  }
  func.func @transform_3(%arg0: i32) -> (i32, i32) {
    %c0_i32 = arith.constant 0 : i32
    %c0_i32_0 = arith.constant 0 : i32
    %c0_i32_1 = arith.constant 0 : i32
    return %c0_i32, %c0_i32_0 : i32, i32
  }
  func.func @transform_4(%arg0: i32) -> (i32, i32) {
    %c0_i32 = arith.constant 0 : i32
    %c0_i32_0 = arith.constant 0 : i32
    %c0_i32_1 = arith.constant 0 : i32
    return %c0_i32, %c0_i32_0 : i32, i32
  }
  func.func @transform_5(%arg0: i32) -> (i32, i32) {
    %c0_i32 = arith.constant 0 : i32
    %c0_i32_0 = arith.constant 0 : i32
    %c0_i32_1 = arith.constant 0 : i32
    return %c0_i32, %c0_i32_0 : i32, i32
  }
  func.func @transform_6(%arg0: i32) -> (i32, i32) {
    %c0_i32 = arith.constant 0 : i32
    %c0_i32_0 = arith.constant 0 : i32
    return %arg0, %c0_i32 : i32, i32
  }
}

</mosaic_0001>

<llo_original>
// kernel: tpu_custom_call.1
$region0: #{tpu_custom_call.1}
  #allocation0 [shape = 'u32[]', space=smem, size = 0x4, offset = 0x4, fixed_abs, tag = 'smem constant byte address 0x4 - core index']
  #allocation1 [shape = 'u32[144,128]{1,0:T(1,128)}', space=vmem, size = 0x12000, scoped, tag = 'internal scratch']
  %s0 = inlined_call_operand.hbm [shape: bf16[16,128], index: 0, kind: input, shape index: {}]
  %s1 = inlined_call_operand.hbm [shape: bf16[128,128], index: 1, kind: input, shape index: {}]
  %s2 = inlined_call_operand.hbm [shape: bf16[128,128], index: 2, kind: input, shape index: {}]
  %s3 = inlined_call_operand.hbm [shape: bf16[128,128], index: 3, kind: input, shape index: {}]
  %s4 = inlined_call_operand.hbm [shape: bf16[128,128], index: 4, kind: input, shape index: {}]
  %s5 = inlined_call_operand.vmem [shape: f32[8,128], index: 5, kind: input, shape index: {}]
  %s6 = inlined_call_operand.hbm [shape: f32[16,128], index: 6, kind: output, shape index: {}]
  %s7 = sld [smem:[#allocation0]]
  $region54: #{tpu_custom_call.1} parent=0
    _
  %s9 = ssub.s32 1, %s7
  %s10 = scalar_select 0, %s9, %s7
  $region1: #{tpu_custom_call.1} parent=0
    #allocation2 [shape = 'u8[4096]{0}', space=vmem, size = 0x1000, scoped, tag = 'input window, operand 0, single buffered']
    #allocation3 [shape = 's32[1]{0}', space=sflag, size = 0x4, scoped, tag = 'scoped memory for tpu_custom_call.1']
    #allocation4 [shape = 's32[1]{0}', space=sflag, size = 0x4, scoped, tag = 'scoped memory for tpu_custom_call.1']
    #allocation5 [shape = 'u8[32768]{0}', space=vmem, size = 0x8000, scoped, tag = 'input window, operand 1, single buffered']
    #allocation6 [shape = 's32[1]{0}', space=sflag, size = 0x4, scoped, tag = 'scoped memory for tpu_custom_call.1']
    #allocation7 [shape = 'u8[32768]{0}', space=vmem, size = 0x8000, scoped, tag = 'input window, operand 2, single buffered']
    #allocation8 [shape = 'u8[32768]{0}', space=vmem, size = 0x8000, scoped, tag = 'input window, operand 3, single buffered']
    #allocation9 [shape = 's32[1]{0}', space=sflag, size = 0x4, scoped, tag = 'scoped memory for tpu_custom_call.1']
    #allocation10 [shape = 'u8[32768]{0}', space=vmem, size = 0x8000, scoped, tag = 'input window, operand 4, single buffered']
    #allocation11 [shape = 'u8[8192]{0}', space=vmem, size = 0x2000, scoped, tag = 'output window, operand 0, single buffered']
    %11 = vsyncpa [#allocation3], 0
    %12 = vsyncpa [#allocation6], 0
    %13 = vsyncpa [#allocation9], 0
    %14 = vsyncpa [#allocation4], 0
    // Predicated region
    $region2: #{tpu_custom_call.1} parent=1 // pred_check
      _
    $region3: #{tpu_custom_call.1} parent=1 // pred_check_branch
      %16 = sbr.rel (0) target = $region5
    $region4: #{tpu_custom_call.1} parent=1 // pred_region
      %s18 = ssub.s32 128, 128
      %19 = vsyncadd [#allocation3], %s18
      %s20 = sshll.u32 [#allocation2], 4
      %s21 = int_to_ptr.vmem [resolvable:$true] %s20
      %26 = dma.hbm_to_vmem [thread:$0]  %s0, 128, %s21, [#allocation3], 64, 64, 4
    $region5: #{tpu_custom_call.1} parent=1 // pred_fallthru
      _
    // Predicated region
    $region6: #{tpu_custom_call.1} parent=1 // pred_check
      _
    $region7: #{tpu_custom_call.1} parent=1 // pred_check_branch
      %28 = sbr.rel (0) target = $region9
    $region8: #{tpu_custom_call.1} parent=1 // pred_region
      %s30 = ssub.s32 1024, 1024
      %31 = vsyncadd [#allocation6], %s30
      %s32 = sshll.u32 [#allocation5], 4
      %s33 = int_to_ptr.vmem [resolvable:$true] %s32
      %38 = dma.hbm_to_vmem [thread:$0]  %s1, 1024, %s33, [#allocation6], 64, 64, 4
    $region9: #{tpu_custom_call.1} parent=1 // pred_fallthru
      _
    // Predicated region
    $region10: #{tpu_custom_call.1} parent=1 // pred_check
      _
    $region11: #{tpu_custom_call.1} parent=1 // pred_check_branch
      %40 = sbr.rel (0) target = $region13
    $region12: #{tpu_custom_call.1} parent=1 // pred_region
      %s42 = ssub.s32 1024, 1024
      %43 = vsyncadd [#allocation6], %s42
      %s44 = sshll.u32 [#allocation7], 4
      %s45 = int_to_ptr.vmem [resolvable:$true] %s44
      %50 = dma.hbm_to_vmem [thread:$0]  %s2, 1024, %s45, [#allocation6], 64, 64, 4
    $region13: #{tpu_custom_call.1} parent=1 // pred_fallthru
      _
    // Predicated region
    $region14: #{tpu_custom_call.1} parent=1 // pred_check
      _
    $region15: #{tpu_custom_call.1} parent=1 // pred_check_branch
      %52 = sbr.rel (0) target = $region17
    $region16: #{tpu_custom_call.1} parent=1 // pred_region
      %s54 = ssub.s32 1024, 1024
      %55 = vsyncadd [#allocation9], %s54
      %s56 = sshll.u32 [#allocation8], 4
      %s57 = int_to_ptr.vmem [resolvable:$true] %s56
      %62 = dma.hbm_to_vmem [thread:$0]  %s3, 1024, %s57, [#allocation9], 64, 64, 4
    $region17: #{tpu_custom_call.1} parent=1 // pred_fallthru
      _
    // Predicated region
    $region18: #{tpu_custom_call.1} parent=1 // pred_check
      _
    $region19: #{tpu_custom_call.1} parent=1 // pred_check_branch
      %64 = sbr.rel (0) target = $region21
    $region20: #{tpu_custom_call.1} parent=1 // pred_region
      %s66 = ssub.s32 1024, 1024
      %67 = vsyncadd [#allocation9], %s66
      %s68 = sshll.u32 [#allocation10], 4
      %s69 = int_to_ptr.vmem [resolvable:$true] %s68
      %74 = dma.hbm_to_vmem [thread:$0]  %s4, 1024, %s69, [#allocation9], 64, 64, 4
    $region21: #{tpu_custom_call.1} parent=1 // pred_fallthru
      _
    // Predicated region
    $region22: #{tpu_custom_call.1} parent=1 // pred_check
      _
    $region23: #{tpu_custom_call.1} parent=1 // pred_check_branch
      %76 = sbr.rel (0) target = $region25
    $region24: #{tpu_custom_call.1} parent=1 // pred_region
      _
    $region25: #{tpu_custom_call.1} parent=1 // pred_fallthru
      _
    // Predicated region
    $region26: #{tpu_custom_call.1} parent=1 // pred_check
      _
    $region27: #{tpu_custom_call.1} parent=1 // pred_check_branch
      %78 = sbr.rel (0) target = $region29
    $region28: #{tpu_custom_call.1} parent=1 // pred_region
      %79 = dma.done [#allocation3], 128
    $region29: #{tpu_custom_call.1} parent=1 // pred_fallthru
      _
    // Predicated region
    $region30: #{tpu_custom_call.1} parent=1 // pred_check
      _
    $region31: #{tpu_custom_call.1} parent=1 // pred_check_branch
      %81 = sbr.rel (0) target = $region33
    $region32: #{tpu_custom_call.1} parent=1 // pred_region
      %82 = dma.done [#allocation6], 1024
    $region33: #{tpu_custom_call.1} parent=1 // pred_fallthru
      _
    // Predicated region
    $region34: #{tpu_custom_call.1} parent=1 // pred_check
      _
    $region35: #{tpu_custom_call.1} parent=1 // pred_check_branch
      %84 = sbr.rel (0) target = $region37
    $region36: #{tpu_custom_call.1} parent=1 // pred_region
      %85 = dma.done [#allocation6], 1024
    $region37: #{tpu_custom_call.1} parent=1 // pred_fallthru
      _
    // Predicated region
    $region38: #{tpu_custom_call.1} parent=1 // pred_check
      _
    $region39: #{tpu_custom_call.1} parent=1 // pred_check_branch
      %87 = sbr.rel (0) target = $region41
    $region40: #{tpu_custom_call.1} parent=1 // pred_region
      %88 = dma.done [#allocation9], 1024
    $region41: #{tpu_custom_call.1} parent=1 // pred_fallthru
      _
    // Predicated region
    $region42: #{tpu_custom_call.1} parent=1 // pred_check
      _
    $region43: #{tpu_custom_call.1} parent=1 // pred_check_branch
      %90 = sbr.rel (0) target = $region45
    $region44: #{tpu_custom_call.1} parent=1 // pred_region
      %91 = dma.done [#allocation9], 1024
    $region45: #{tpu_custom_call.1} parent=1 // pred_fallthru
      _
    %v93 = vld [vmem:[%s5] sm:$0xff]
    %v94 = vlaneseq
    %v95 = vand.u32 %v94, 127
    %vm96 = vcmp.lt.s32.totalorder %v95, 32
    %v97 = vld [vmem:[#allocation2] sm:$0xf]
    %v98 = vld [vmem:[#allocation2 + $0x4] sm:$0xf]
    %v99 = vld [vmem:[#allocation5] sm:$0xf]
    %v100 = vld [vmem:[#allocation5 + $0x4] sm:$0xf]
    %v101 = vld [vmem:[#allocation5 + $0x8] sm:$0xf]
    %v102 = vld [vmem:[#allocation5 + $0xc] sm:$0xf]
    %v103 = vld [vmem:[#allocation5 + $0x10] sm:$0xf]
    %v104 = vld [vmem:[#allocation5 + $0x14] sm:$0xf]
    %v105 = vld [vmem:[#allocation5 + $0x18] sm:$0xf]
    %v106 = vld [vmem:[#allocation5 + $0x1c] sm:$0xf]
    %v107 = vld [vmem:[#allocation5 + $0x20] sm:$0xf]
    %v108 = vld [vmem:[#allocation5 + $0x24] sm:$0xf]
    %v109 = vld [vmem:[#allocation5 + $0x28] sm:$0xf]
    %v110 = vld [vmem:[#allocation5 + $0x2c] sm:$0xf]
    %v111 = vld [vmem:[#allocation5 + $0x30] sm:$0xf]
    %v112 = vld [vmem:[#allocation5 + $0x34] sm:$0xf]
    %v113 = vld [vmem:[#allocation5 + $0x38] sm:$0xf]
    %v114 = vld [vmem:[#allocation5 + $0x3c] sm:$0xf]
    %v115 = vlaneseq
    %v116 = vshrl.u32 %v115, 7
    %v117 = vsub.s32 0, %v116
    %v118 = vrot.slane %v93, %v117
    %v121 = vunpack.c.l.b16 %v97
    %v122 = vunpack.c.l.b16 %v98
    %v123 = vpack.c.b16 %v122, %v121
    %v141 = vunpack.c.l.b16 %v99
    %v142 = vunpack.c.l.b16 %v100
    %v143 = vunpack.c.l.b16 %v101
    %v144 = vunpack.c.l.b16 %v102
    %v145 = vunpack.c.l.b16 %v103
    %v146 = vunpack.c.l.b16 %v104
    %v147 = vunpack.c.l.b16 %v105
    %v148 = vunpack.c.l.b16 %v106
    %v149 = vunpack.c.l.b16 %v107
    %v150 = vunpack.c.l.b16 %v108
    %v151 = vunpack.c.l.b16 %v109
    %v152 = vunpack.c.l.b16 %v110
    %v153 = vunpack.c.l.b16 %v111
    %v154 = vunpack.c.l.b16 %v112
    %v155 = vunpack.c.l.b16 %v113
    %v156 = vunpack.c.l.b16 %v114
    %v157 = vpack.c.b16 %v142, %v141
    %v158 = vpack.c.b16 %v144, %v143
    %v159 = vpack.c.b16 %v146, %v145
    %v160 = vpack.c.b16 %v148, %v147
    %v161 = vpack.c.b16 %v150, %v149
    %v162 = vpack.c.b16 %v152, %v151
    %v163 = vpack.c.b16 %v154, %v153
    %v164 = vpack.c.b16 %v156, %v155
    %173 = vmatprep.subr.bf16.mxu0 0
    %174 = vmatpush1.bf16.msra.mxu0 %v157
    %175 = vmatprep.subr.bf16.mxu0 0
    %176 = vmatpush1.bf16.msra.mxu0 %v158
    %177 = vmatprep.subr.bf16.mxu0 0
    %178 = vmatpush1.bf16.msra.mxu0 %v159
    %179 = vmatprep.subr.bf16.mxu0 0
    %180 = vmatpush1.bf16.msra.mxu0 %v160
    %181 = vmatprep.subr.bf16.mxu0 0
    %182 = vmatpush1.bf16.msra.mxu0 %v161
    %183 = vmatprep.subr.bf16.mxu0 0
    %184 = vmatpush1.bf16.msra.mxu0 %v162
    %185 = vmatprep.subr.bf16.mxu0 0
    %186 = vmatpush1.bf16.msra.mxu0 %v163
    %187 = vmatprep.subr.bf16.mxu0 0
    %188 = vmatpush1.bf16.msra.mxu0 %v164
    %189 = vmatprep.subr.bf16.mxu0 0
    %190 = vmatpush1.bf16.msra.mxu0 0
    %191 = vmatprep.subr.bf16.mxu0 0
    %192 = vmatpush1.bf16.msra.mxu0 0
    %193 = vmatprep.subr.bf16.mxu0 0
    %194 = vmatpush1.bf16.msra.mxu0 0
    %195 = vmatprep.subr.bf16.mxu0 0
    %196 = vmatpush1.bf16.msra.mxu0 0
    %197 = vmatprep.subr.bf16.mxu0 0
    %198 = vmatpush1.bf16.msra.mxu0 0
    %199 = vmatprep.subr.bf16.mxu0 0
    %200 = vmatpush1.bf16.msra.mxu0 0
    %201 = vmatprep.subr.bf16.mxu0 0
    %202 = vmatpush1.bf16.msra.mxu0 0
    %203 = vmatprep.subr.bf16.mxu0 0
    %204 = vmatpush1.bf16.msra.mxu0 0
    %205 = vmatprep.mubr.bf16.mxu0 0
    %206 = vmatmul.mubr.bf16.gmra.mrb[0].mxu0 %v123
    %v207 = vpop.f32.mrb[0].mxu0
    %v208 = vadd.f32 %v118, %v207
    %v209 = vpop.f32.mrb[0].mxu0
    %v210 = vpop.f32.mrb[0].mxu0
    %v211 = vadd.f32 %v118, %v210
    %v212 = vpop.f32.mrb[0].mxu0
    %213 = vdwg.mxu0
    %v214 = vmax.f32 %v208, 0.0
    %v215 = vmax.f32 %v211, 0.0
    %216 = vadd.xlane.f32.xlu0 %v214
    %v217 = vpop.xlane.xlu0 %216
    %218 = vadd.xlane.f32.xlu0 %v215
    %v219 = vpop.xlane.xlu0 %218
    %v220 = vmul.f32 %v217, 0.03125
    %v221 = vmul.f32 %v219, 0.03125
    %v222 = vsub.f32 %v214, %v220
    %v223 = vsub.f32 %v215, %v221
    %v224 = vsel %vm96, 1, 0
    %vm225 = vcmp.eq.s32.totalorder %v224, 1
    %v226 = vsel %vm225, %v222, 0.0
    %v227 = vsel %vm225, %v223, 0.0
    %v228 = vmul.f32 %v226, %v226
    %v229 = vmul.f32 %v227, %v227
    %230 = vadd.xlane.f32.xlu0 %v228
    %v231 = vpop.xlane.xlu0 %230
    %232 = vadd.xlane.f32.xlu0 %v229
    %v233 = vpop.xlane.xlu0 %232
    %v234 = vmul.f32 %v231, 0.03125
    %v235 = vmul.f32 %v233, 0.03125
    %v236 = vadd.f32 %v234, 1e-05
    %v237 = vadd.f32 %v235, 1e-05
    %v238 = vrsqrt.pop %v236
    %v239 = vrsqrt.pop %v237
    %v240 = vmul.f32 %v226, %v238
    %v241 = vmul.f32 %v227, %v239
    %v242 = vlaneseq
    %v243 = vshrl.u32 %v242, 7
    %v244 = vsub.s32 1, %v243
    %v245 = vrot.slane %v93, %v244
    %v246 = vmul.f32 %v240, %v245
    %v247 = vmul.f32 %v241, %v245
    %v248 = vlaneseq
    %v249 = vshrl.u32 %v248, 7
    %v250 = vsub.s32 2, %v249
    %v251 = vrot.slane %v93, %v250
    %v252 = vadd.f32 %v246, %v251
    %v253 = vadd.f32 %v247, %v251
    %v254 = vmax.f32 %v252, 0.0
    %v255 = vmax.f32 %v253, 0.0
    %v256 = vpack.c.bf16 %v255, %v254
    %v257 = vld [vmem:[#allocation7] sm:$0xf]
    %v258 = vld [vmem:[#allocation7 + $0x4] sm:$0xf]
    %v259 = vld [vmem:[#allocation7 + $0x8] sm:$0xf]
    %v260 = vld [vmem:[#allocation7 + $0xc] sm:$0xf]
    %v261 = vld [vmem:[#allocation7 + $0x10] sm:$0xf]
    %v262 = vld [vmem:[#allocation7 + $0x14] sm:$0xf]
    %v263 = vld [vmem:[#allocation7 + $0x18] sm:$0xf]
    %v264 = vld [vmem:[#allocation7 + $0x1c] sm:$0xf]
    %v265 = vld [vmem:[#allocation7 + $0x20] sm:$0xf]
    %v266 = vld [vmem:[#allocation7 + $0x24] sm:$0xf]
    %v267 = vld [vmem:[#allocation7 + $0x28] sm:$0xf]
    %v268 = vld [vmem:[#allocation7 + $0x2c] sm:$0xf]
    %v269 = vld [vmem:[#allocation7 + $0x30] sm:$0xf]
    %v270 = vld [vmem:[#allocation7 + $0x34] sm:$0xf]
    %v271 = vld [vmem:[#allocation7 + $0x38] sm:$0xf]
    %v272 = vld [vmem:[#allocation7 + $0x3c] sm:$0xf]
    %v273 = vlaneseq
    %v274 = vshrl.u32 %v273, 7
    %v275 = vsub.s32 3, %v274
    %v276 = vrot.slane %v93, %v275
    %v293 = vunpack.c.l.b16 %v257
    %v294 = vunpack.c.l.b16 %v258
    %v295 = vunpack.c.l.b16 %v259
    %v296 = vunpack.c.l.b16 %v260
    %v297 = vunpack.c.l.b16 %v261
    %v298 = vunpack.c.l.b16 %v262
    %v299 = vunpack.c.l.b16 %v263
    %v300 = vunpack.c.l.b16 %v264
    %v301 = vunpack.c.l.b16 %v265
    %v302 = vunpack.c.l.b16 %v266
    %v303 = vunpack.c.l.b16 %v267
    %v304 = vunpack.c.l.b16 %v268
    %v305 = vunpack.c.l.b16 %v269
    %v306 = vunpack.c.l.b16 %v270
    %v307 = vunpack.c.l.b16 %v271
    %v308 = vunpack.c.l.b16 %v272
    %v309 = vpack.c.b16 %v294, %v293
    %v310 = vpack.c.b16 %v296, %v295
    %v311 = vpack.c.b16 %v298, %v297
    %v312 = vpack.c.b16 %v300, %v299
    %v313 = vpack.c.b16 %v302, %v301
    %v314 = vpack.c.b16 %v304, %v303
    %v315 = vpack.c.b16 %v306, %v305
    %v316 = vpack.c.b16 %v308, %v307
    %325 = vmatprep.subr.bf16.mxu0 0
    %326 = vmatpush1.bf16.msra.mxu0 %v309
    %327 = vmatprep.subr.bf16.mxu0 0
    %328 = vmatpush1.bf16.msra.mxu0 %v310
    %329 = vmatprep.subr.bf16.mxu0 0
    %330 = vmatpush1.bf16.msra.mxu0 %v311
    %331 = vmatprep.subr.bf16.mxu0 0
    %332 = vmatpush1.bf16.msra.mxu0 %v312
    %333 = vmatprep.subr.bf16.mxu0 0
    %334 = vmatpush1.bf16.msra.mxu0 %v313
    %335 = vmatprep.subr.bf16.mxu0 0
    %336 = vmatpush1.bf16.msra.mxu0 %v314
    %337 = vmatprep.subr.bf16.mxu0 0
    %338 = vmatpush1.bf16.msra.mxu0 %v315
    %339 = vmatprep.subr.bf16.mxu0 0
    %340 = vmatpush1.bf16.msra.mxu0 %v316
    %341 = vmatprep.subr.bf16.mxu0 0
    %342 = vmatpush1.bf16.msra.mxu0 0
    %343 = vmatprep.subr.bf16.mxu0 0
    %344 = vmatpush1.bf16.msra.mxu0 0
    %345 = vmatprep.subr.bf16.mxu0 0
    %346 = vmatpush1.bf16.msra.mxu0 0
    %347 = vmatprep.subr.bf16.mxu0 0
    %348 = vmatpush1.bf16.msra.mxu0 0
    %349 = vmatprep.subr.bf16.mxu0 0
    %350 = vmatpush1.bf16.msra.mxu0 0
    %351 = vmatprep.subr.bf16.mxu0 0
    %352 = vmatpush1.bf16.msra.mxu0 0
    %353 = vmatprep.subr.bf16.mxu0 0
    %354 = vmatpush1.bf16.msra.mxu0 0
    %355 = vmatprep.subr.bf16.mxu0 0
    %356 = vmatpush1.bf16.msra.mxu0 0
    %357 = vmatprep.mubr.bf16.mxu0 0
    %358 = vmatmul.mubr.bf16.gmra.mrb[0].mxu0 %v256
    %v359 = vpop.f32.mrb[0].mxu0
    %v360 = vadd.f32 %v276, %v359
    %v361 = vpop.f32.mrb[0].mxu0
    %v362 = vpop.f32.mrb[0].mxu0
    %v363 = vadd.f32 %v276, %v362
    %v364 = vpop.f32.mrb[0].mxu0
    %365 = vdwg.mxu0
    %v366 = vadd.f32 %v360, %v214
    %v367 = vadd.f32 %v363, %v215
    %368 = vadd.xlane.f32.xlu0 %v366
    %v369 = vpop.xlane.xlu0 %368
    %370 = vadd.xlane.f32.xlu0 %v367
    %v371 = vpop.xlane.xlu0 %370
    %v372 = vmul.f32 %v369, 0.03125
    %v373 = vmul.f32 %v371, 0.03125
    %v374 = vsub.f32 %v366, %v372
    %v375 = vsub.f32 %v367, %v373
    %v376 = vsel %vm225, %v374, 0.0
    %v377 = vsel %vm225, %v375, 0.0
    %v378 = vmul.f32 %v376, %v376
    %v379 = vmul.f32 %v377, %v377
    %380 = vadd.xlane.f32.xlu0 %v378
    %v381 = vpop.xlane.xlu0 %380
    %382 = vadd.xlane.f32.xlu0 %v379
    %v383 = vpop.xlane.xlu0 %382
    %v384 = vmul.f32 %v381, 0.03125
    %v385 = vmul.f32 %v383, 0.03125
    %v386 = vadd.f32 %v384, 1e-05
    %v387 = vadd.f32 %v385, 1e-05
    %v388 = vrsqrt.pop %v386
    %v389 = vrsqrt.pop %v387
    %v390 = vmul.f32 %v376, %v388
    %v391 = vmul.f32 %v377, %v389
    %v392 = vlaneseq
    %v393 = vshrl.u32 %v392, 7
    %v394 = vsub.s32 4, %v393
    %v395 = vrot.slane %v93, %v394
    %v396 = vmul.f32 %v390, %v395
    %v397 = vmul.f32 %v391, %v395
    %v398 = vlaneseq
    %v399 = vshrl.u32 %v398, 7
    %v400 = vsub.s32 5, %v399
    %v401 = vrot.slane %v93, %v400
    %v402 = vadd.f32 %v396, %v401
    %v403 = vadd.f32 %v397, %v401
    %v404 = vxor.u32 %v402, 2147483648
    %v405 = vxor.u32 %v403, 2147483648
    %v406 = vmul.f32 %v404, 1.442695
    %v407 = vpow.pop %v406
    %v408 = vmul.f32 %v405, 1.442695
    %v409 = vpow.pop %v408
    %v410 = vadd.f32 %v407, 1.0
    %v411 = vadd.f32 %v409, 1.0
    %v412 = vrcp.pop %v410
    %v413 = vmul.f32 1.0, %v412
    %v414 = vrcp.pop %v411
    %v415 = vmul.f32 1.0, %v414
    %v416 = vmul.f32 %v402, %v413
    %v417 = vmul.f32 %v403, %v415
    %v418 = vpack.c.bf16 %v417, %v416
    %v419 = vld [vmem:[#allocation8] sm:$0xf]
    %v420 = vld [vmem:[#allocation8 + $0x4] sm:$0xf]
    %v421 = vld [vmem:[#allocation8 + $0x8] sm:$0xf]
    %v422 = vld [vmem:[#allocation8 + $0xc] sm:$0xf]
    %v423 = vld [vmem:[#allocation8 + $0x10] sm:$0xf]
    %v424 = vld [vmem:[#allocation8 + $0x14] sm:$0xf]
    %v425 = vld [vmem:[#allocation8 + $0x18] sm:$0xf]
    %v426 = vld [vmem:[#allocation8 + $0x1c] sm:$0xf]
    %v427 = vld [vmem:[#allocation8 + $0x20] sm:$0xf]
    %v428 = vld [vmem:[#allocation8 + $0x24] sm:$0xf]
    %v429 = vld [vmem:[#allocation8 + $0x28] sm:$0xf]
    %v430 = vld [vmem:[#allocation8 + $0x2c] sm:$0xf]
    %v431 = vld [vmem:[#allocation8 + $0x30] sm:$0xf]
    %v432 = vld [vmem:[#allocation8 + $0x34] sm:$0xf]
    %v433 = vld [vmem:[#allocation8 + $0x38] sm:$0xf]
    %v434 = vld [vmem:[#allocation8 + $0x3c] sm:$0xf]
    %v435 = vlaneseq
    %v436 = vshrl.u32 %v435, 7
    %v437 = vsub.s32 6, %v436
    %v438 = vrot.slane %v93, %v437
    %v455 = vunpack.c.l.b16 %v419
    %v456 = vunpack.c.l.b16 %v420
    %v457 = vunpack.c.l.b16 %v421
    %v458 = vunpack.c.l.b16 %v422
    %v459 = vunpack.c.l.b16 %v423
    %v460 = vunpack.c.l.b16 %v424
    %v461 = vunpack.c.l.b16 %v425
    %v462 = vunpack.c.l.b16 %v426
    %v463 = vunpack.c.l.b16 %v427
    %v464 = vunpack.c.l.b16 %v428
    %v465 = vunpack.c.l.b16 %v429
    %v466 = vunpack.c.l.b16 %v430
    %v467 = vunpack.c.l.b16 %v431
    %v468 = vunpack.c.l.b16 %v432
    %v469 = vunpack.c.l.b16 %v433
    %v470 = vunpack.c.l.b16 %v434
    %v471 = vpack.c.b16 %v456, %v455
    %v472 = vpack.c.b16 %v458, %v457
    %v473 = vpack.c.b16 %v460, %v459
    %v474 = vpack.c.b16 %v462, %v461
    %v475 = vpack.c.b16 %v464, %v463
    %v476 = vpack.c.b16 %v466, %v465
    %v477 = vpack.c.b16 %v468, %v467
    %v478 = vpack.c.b16 %v470, %v469
    %487 = vmatprep.subr.bf16.mxu0 0
    %488 = vmatpush1.bf16.msra.mxu0 %v471
    %489 = vmatprep.subr.bf16.mxu0 0
    %490 = vmatpush1.bf16.msra.mxu0 %v472
    %491 = vmatprep.subr.bf16.mxu0 0
    %492 = vmatpush1.bf16.msra.mxu0 %v473
    %493 = vmatprep.subr.bf16.mxu0 0
    %494 = vmatpush1.bf16.msra.mxu0 %v474
    %495 = vmatprep.subr.bf16.mxu0 0
    %496 = vmatpush1.bf16.msra.mxu0 %v475
    %497 = vmatprep.subr.bf16.mxu0 0
    %498 = vmatpush1.bf16.msra.mxu0 %v476
    %499 = vmatprep.subr.bf16.mxu0 0
    %500 = vmatpush1.bf16.msra.mxu0 %v477
    %501 = vmatprep.subr.bf16.mxu0 0
    %502 = vmatpush1.bf16.msra.mxu0 %v478
    %503 = vmatprep.subr.bf16.mxu0 0
    %504 = vmatpush1.bf16.msra.mxu0 0
    %505 = vmatprep.subr.bf16.mxu0 0
    %506 = vmatpush1.bf16.msra.mxu0 0
    %507 = vmatprep.subr.bf16.mxu0 0
    %508 = vmatpush1.bf16.msra.mxu0 0
    %509 = vmatprep.subr.bf16.mxu0 0
    %510 = vmatpush1.bf16.msra.mxu0 0
    %511 = vmatprep.subr.bf16.mxu0 0
    %512 = vmatpush1.bf16.msra.mxu0 0
    %513 = vmatprep.subr.bf16.mxu0 0
    %514 = vmatpush1.bf16.msra.mxu0 0
    %515 = vmatprep.subr.bf16.mxu0 0
    %516 = vmatpush1.bf16.msra.mxu0 0
    %517 = vmatprep.subr.bf16.mxu0 0
    %518 = vmatpush1.bf16.msra.mxu0 0
    %519 = vmatprep.mubr.bf16.mxu0 0
    %520 = vmatmul.mubr.bf16.gmra.mrb[0].mxu0 %v418
    %v521 = vpop.f32.mrb[0].mxu0
    %v522 = vadd.f32 %v438, %v521
    %v523 = vpop.f32.mrb[0].mxu0
    %v524 = vpop.f32.mrb[0].mxu0
    %v525 = vadd.f32 %v438, %v524
    %v526 = vpop.f32.mrb[0].mxu0
    %527 = vdwg.mxu0
    %v528 = vpack.c.bf16 %v525, %v522
    %v529 = vld [vmem:[#allocation10] sm:$0xf]
    %v530 = vld [vmem:[#allocation10 + $0x4] sm:$0xf]
    %v531 = vld [vmem:[#allocation10 + $0x8] sm:$0xf]
    %v532 = vld [vmem:[#allocation10 + $0xc] sm:$0xf]
    %v533 = vld [vmem:[#allocation10 + $0x10] sm:$0xf]
    %v534 = vld [vmem:[#allocation10 + $0x14] sm:$0xf]
    %v535 = vld [vmem:[#allocation10 + $0x18] sm:$0xf]
    %v536 = vld [vmem:[#allocation10 + $0x1c] sm:$0xf]
    %v537 = vld [vmem:[#allocation10 + $0x20] sm:$0xf]
    %v538 = vld [vmem:[#allocation10 + $0x24] sm:$0xf]
    %v539 = vld [vmem:[#allocation10 + $0x28] sm:$0xf]
    %v540 = vld [vmem:[#allocation10 + $0x2c] sm:$0xf]
    %v541 = vld [vmem:[#allocation10 + $0x30] sm:$0xf]
    %v542 = vld [vmem:[#allocation10 + $0x34] sm:$0xf]
    %v543 = vld [vmem:[#allocation10 + $0x38] sm:$0xf]
    %v544 = vld [vmem:[#allocation10 + $0x3c] sm:$0xf]
    %v545 = vlaneseq
    %v546 = vshrl.u32 %v545, 7
    %v547 = vsub.s32 7, %v546
    %v548 = vrot.slane %v93, %v547
    %v565 = vunpack.c.l.b16 %v529
    %v566 = vunpack.c.l.b16 %v530
    %v567 = vunpack.c.l.b16 %v531
    %v568 = vunpack.c.l.b16 %v532
    %v569 = vunpack.c.l.b16 %v533
    %v570 = vunpack.c.l.b16 %v534
    %v571 = vunpack.c.l.b16 %v535
    %v572 = vunpack.c.l.b16 %v536
    %v573 = vunpack.c.l.b16 %v537
    %v574 = vunpack.c.l.b16 %v538
    %v575 = vunpack.c.l.b16 %v539
    %v576 = vunpack.c.l.b16 %v540
    %v577 = vunpack.c.l.b16 %v541
    %v578 = vunpack.c.l.b16 %v542
    %v579 = vunpack.c.l.b16 %v543
    %v580 = vunpack.c.l.b16 %v544
    %v581 = vpack.c.b16 %v566, %v565
    %v582 = vpack.c.b16 %v568, %v567
    %v583 = vpack.c.b16 %v570, %v569
    %v584 = vpack.c.b16 %v572, %v571
    %v585 = vpack.c.b16 %v574, %v573
    %v586 = vpack.c.b16 %v576, %v575
    %v587 = vpack.c.b16 %v578, %v577
    %v588 = vpack.c.b16 %v580, %v579
    %597 = vmatprep.subr.bf16.mxu0 0
    %598 = vmatpush1.bf16.msra.mxu0 %v581
    %599 = vmatprep.subr.bf16.mxu0 0
    %600 = vmatpush1.bf16.msra.mxu0 %v582
    %601 = vmatprep.subr.bf16.mxu0 0
    %602 = vmatpush1.bf16.msra.mxu0 %v583
    %603 = vmatprep.subr.bf16.mxu0 0
    %604 = vmatpush1.bf16.msra.mxu0 %v584
    %605 = vmatprep.subr.bf16.mxu0 0
    %606 = vmatpush1.bf16.msra.mxu0 %v585
    %607 = vmatprep.subr.bf16.mxu0 0
    %608 = vmatpush1.bf16.msra.mxu0 %v586
    %609 = vmatprep.subr.bf16.mxu0 0
    %610 = vmatpush1.bf16.msra.mxu0 %v587
    %611 = vmatprep.subr.bf16.mxu0 0
    %612 = vmatpush1.bf16.msra.mxu0 %v588
    %613 = vmatprep.subr.bf16.mxu0 0
    %614 = vmatpush1.bf16.msra.mxu0 0
    %615 = vmatprep.subr.bf16.mxu0 0
    %616 = vmatpush1.bf16.msra.mxu0 0
    %617 = vmatprep.subr.bf16.mxu0 0
    %618 = vmatpush1.bf16.msra.mxu0 0
    %619 = vmatprep.subr.bf16.mxu0 0
    %620 = vmatpush1.bf16.msra.mxu0 0
    %621 = vmatprep.subr.bf16.mxu0 0
    %622 = vmatpush1.bf16.msra.mxu0 0
    %623 = vmatprep.subr.bf16.mxu0 0
    %624 = vmatpush1.bf16.msra.mxu0 0
    %625 = vmatprep.subr.bf16.mxu0 0
    %626 = vmatpush1.bf16.msra.mxu0 0
    %627 = vmatprep.subr.bf16.mxu0 0
    %628 = vmatpush1.bf16.msra.mxu0 0
    %629 = vmatprep.mubr.bf16.mxu0 0
    %630 = vmatmul.mubr.bf16.gmra.mrb[0].mxu0 %v528
    %v631 = vpop.f32.mrb[0].mxu0
    %v632 = vadd.f32 %v548, %v631
    %v633 = vpop.f32.mrb[0].mxu0
    %v634 = vpop.f32.mrb[0].mxu0
    %v635 = vadd.f32 %v548, %v634
    %v636 = vpop.f32.mrb[0].mxu0
    %637 = vdwg.mxu0
    %638 = vst [vmem:[#allocation11] sm:$0xff] %v632
    %639 = vst [vmem:[#allocation11 + $0x8] sm:$0xff] %v635
    // Predicated region
    $region46: #{tpu_custom_call.1} parent=1 // pred_check
      _
    $region47: #{tpu_custom_call.1} parent=1 // pred_check_branch
      %641 = sbr.rel (0) target = $region49
    $region48: #{tpu_custom_call.1} parent=1 // pred_region
      %s643 = ssub.s32 256, 256
      %644 = vsyncadd [#allocation4], %s643
      %s645 = sshll.u32 [#allocation11], 4
      %s646 = int_to_ptr.vmem [resolvable:$true] %s645
      %651 = dma.vmem_to_hbm [thread:$0]  %s646, 256, %s6, [#allocation4], 128, 128, 8
    $region49: #{tpu_custom_call.1} parent=1 // pred_fallthru
      _
    // Predicated region
    $region50: #{tpu_custom_call.1} parent=1 // pred_check
      _
    $region51: #{tpu_custom_call.1} parent=1 // pred_check_branch
      %653 = sbr.rel (0) target = $region53
    $region52: #{tpu_custom_call.1} parent=1 // pred_region
      %654 = dma.done [#allocation4], 256
    $region53: #{tpu_custom_call.1} parent=1 // pred_fallthru
      _
    %655 = vsyncpa [#allocation3], 1
    %656 = vsyncpa [#allocation6], 1
    %657 = vsyncpa [#allocation9], 1
    %658 = vsyncpa [#allocation4], 1

</llo_original>
